<compile_context>
chip_gen: v7x
topology: tpu7x:2x2x1
jax: 0.10.0
libtpu: 0.0.40
codegen_flags: <defaults>
</compile_context>

<pallas_src>
import functools

import jax
import jax.numpy as jnp
from jax import lax
from jax.experimental import pallas as pl
from jax.experimental.pallas import tpu as pltpu

LANE = 128


def _round_up(v, m):
    return ((v + m - 1) // m) * m


def _lane_tiles(f):
    return -(-f // LANE)


# ---------------------------------------------------------------------------
# Fused Pallas kernel: both GCN layers in one call, intermediate kept in VMEM.
#   refs = (adj, x, w1, b1, w2, b2, ..., out)     (one graph per grid step)
# ---------------------------------------------------------------------------
def _fused_multigcn_kernel(*refs, num_layers, compute_dtype):
    adj_ref, x_ref = refs[0], refs[1]
    out_ref = refs[-1]
    wb_refs = refs[2:-1]

    adj = adj_ref[0]            # [N, N]   compute_dtype (bf16)
    h = x_ref[0]                # [N, F0p] compute_dtype (bf16)
    for i in range(num_layers):
        w = wb_refs[2 * i][...]        # [F_in_p, F_out_p] compute_dtype
        b = wb_refs[2 * i + 1][...]    # [1, F_out_p]      f32
        f_in, f_out = w.shape
        # MXU work is quantised to 128-lane output tiles: compare lane-tile
        # counts, not raw widths.  Ties -> transform-first (PyG ordering).
        if _lane_tiles(f_in) < _lane_tiles(f_out):
            # aggregate at the narrower width first: (A @ H) @ W
            agg = jnp.dot(adj, h, preferred_element_type=jnp.float32)
            h32 = jnp.dot(agg.astype(compute_dtype), w,
                          preferred_element_type=jnp.float32)
        else:
            # transform first, then aggregate: A @ (H @ W)
            xw = jnp.dot(h, w, preferred_element_type=jnp.float32)
            h32 = jnp.dot(adj, xw.astype(compute_dtype),
                          preferred_element_type=jnp.float32)
        h32 = h32 + b                          # elementwise stays f32 (v5e VPU)
        if i + 1 < num_layers:
            h32 = jnp.maximum(h32, 0.0)        # ReLU; dropout p=0.0 -> identity
            h = h32.astype(compute_dtype)      # bf16 operand for next matmul
        else:
            h = h32
    out_ref[0] = h.astype(out_ref.dtype)


def fused_multigcn(adj_b, x_b, flat_params, *, num_layers,
                   compute_dtype=jnp.bfloat16):
    """Whole MultiGCN forward for a batch of graphs in a single Pallas call.

    adj_b: [B, N, N] f32 normalized adjacency; x_b: [B, N, F0p] f32 (lane padded);
    flat_params: [W1(F0p,F1p), b1(1,F1p), W2(F1p,F2p), b2(1,F2p), ...] f32.
    """
    b, n, _ = adj_b.shape
    f0p = x_b.shape[-1]
    f_out_final_p = flat_params[-2].shape[1]

    # Cast matmul operands to bf16 (f32 accumulation in-kernel); biases stay f32.
    adj_c = adj_b.astype(compute_dtype)
    x_c = x_b.astype(compute_dtype)
    wb = []
    for i, p in enumerate(flat_params):
        wb.append(p.astype(compute_dtype) if i % 2 == 0 else p.astype(jnp.float32))

    in_specs = [
        pl.BlockSpec((1, n, n), lambda bi: (bi, 0, 0)),
        pl.BlockSpec((1, n, f0p), lambda bi: (bi, 0, 0)),
    ]
    for p in wb:
        in_specs.append(pl.BlockSpec(p.shape, lambda bi: (0, 0)))
    out_spec = pl.BlockSpec((1, n, f_out_final_p), lambda bi: (bi, 0, 0))

    # Honest cost hint for XLA's scheduler.
    itemsize = jnp.dtype(compute_dtype).itemsize
    flops = 0
    bytes_accessed = adj_c.size * itemsize + x_c.size * itemsize
    for i in range(num_layers):
        f_in_p, f_out_p = flat_params[2 * i].shape
        flops += b * (2 * n * f_in_p * f_out_p + 2 * n * n * f_out_p)
        bytes_accessed += (flat_params[2 * i].size * itemsize
                           + flat_params[2 * i + 1].size * 4)
    bytes_accessed += b * n * f_out_final_p * 4
    cost = pl.CostEstimate(flops=flops, transcendentals=0,
                           bytes_accessed=bytes_accessed)

    kernel = functools.partial(_fused_multigcn_kernel,
                               num_layers=num_layers,
                               compute_dtype=compute_dtype)
    return pl.pallas_call(
        kernel,
        out_shape=jax.ShapeDtypeStruct((b, n, f_out_final_p), jnp.float32),
        grid=(b,),
        in_specs=in_specs,
        out_specs=out_spec,
        compiler_params=pltpu.CompilerParams(
            dimension_semantics=("parallel",)),
        cost_estimate=cost,
    )(adj_c, x_c, *wb)


# ---------------------------------------------------------------------------
# Glue: dense symmetric-normalized adjacency (PyG gcn_norm), scatter-free.
# ---------------------------------------------------------------------------
def build_norm_adj(edge_index, num_nodes):
    src = edge_index[0].astype(jnp.int32)
    dst = edge_index[1].astype(jnp.int32)
    e_w = jnp.ones(src.shape, jnp.float32)

    oh_src_e = jax.nn.one_hot(src, num_nodes, dtype=jnp.float32)   # [E, N]
    oh_dst_e = jax.nn.one_hot(dst, num_nodes, dtype=jnp.float32)   # [E, N]

    # add_remaining_self_loops: only nodes without an existing self-loop get one.
    has_self = (oh_src_e * oh_dst_e).sum(axis=0) > 0
    loop_w = jnp.where(has_self, 0.0, 1.0)

    eye = jnp.eye(num_nodes, dtype=jnp.float32)
    oh_src = jnp.concatenate([oh_src_e, eye], axis=0)               # [E+N, N]
    oh_dst = jnp.concatenate([oh_dst_e, eye], axis=0)
    w_all = jnp.concatenate([e_w, loop_w], axis=0)

    # Degree over target nodes (matvec, no scatter). Duplicate edges accumulate,
    # matching PyG when edge_index is not coalesced.
    deg = w_all @ oh_dst
    dinv = jnp.where(deg > 0, lax.rsqrt(deg), 0.0)
    norm = (oh_src @ dinv) * w_all * (oh_dst @ dinv)

    # adj[i, j] = sum_e norm_e * [dst_e == i] * [src_e == j]   (MXU matmul)
    adj = (oh_dst * norm[:, None]).T @ oh_src
    return adj


# ---------------------------------------------------------------------------
# Parameter init + padding
# ---------------------------------------------------------------------------
def init_params(key, n_units):
    """Deterministic glorot-ish init; GCNConv bias initialized to zeros."""
    params = []
    for i in range(len(n_units) - 1):
        key, wk = jax.random.split(key)
        f_in, f_out = n_units[i], n_units[i + 1]
        scale = jnp.sqrt(6.0 / (f_in + f_out))
        # stored transposed: [F_in, F_out] so the kernel does X @ W^T directly
        w_t = jax.random.uniform(wk, (f_in, f_out), jnp.float32, -scale, scale)
        b = jnp.zeros((f_out,), jnp.float32)
        params.append((w_t, b))
    return params


def _pad_params(params, f0):
    """Zero-pad every layer to 128-lane multiples (exact)."""
    f0_p = _round_up(f0, LANE)
    flat = []
    in_dim = f0_p
    for (w_t, b) in params:
        f_in, f_out = w_t.shape
        f_out_p = _round_up(f_out, LANE)
        w_p = jnp.zeros((in_dim, f_out_p), jnp.float32).at[:f_in, :f_out].set(w_t)
        b_p = jnp.zeros((1, f_out_p), jnp.float32).at[:, :f_out].set(b.reshape(1, -1))
        flat.extend([w_p, b_p])
        in_dim = f_out_p
    return flat, f0_p


# ---------------------------------------------------------------------------
# MultiGCN forward (single graph + batched)
# ---------------------------------------------------------------------------
def multi_gcn_forward_batched(params, x_b, edges_b, *,
                              compute_dtype=jnp.bfloat16, keep_padded=False):
    bsz, n, f0 = x_b.shape
    adj_b = jax.vmap(lambda e: build_norm_adj(e, n))(edges_b)
    flat, f0_p = _pad_params(params, f0)
    x_p = jnp.zeros((bsz, n, f0_p), jnp.float32).at[:, :, :f0].set(x_b)
    out_padded = fused_multigcn(adj_b, x_p, flat, num_layers=len(params),
                                compute_dtype=compute_dtype)
    if keep_padded:
        # Lane-dense [B, N, 128] output; downstream reads the first 100 cols.
        return out_padded
    return out_padded[..., :params[-1][0].shape[1]]


def multi_gcn_forward(params, x, edge_index, *,
                      compute_dtype=jnp.bfloat16, keep_padded=False):
    out = multi_gcn_forward_batched(params, x[None], edge_index[None],
                                    compute_dtype=compute_dtype,
                                    keep_padded=keep_padded)
    return out[0]


# ---------------------------------------------------------------------------
# Pure-JAX references (same adjacency; optionally same bf16 operand casting)
# ---------------------------------------------------------------------------
def ref_forward(params, x, edges, compute_dtype=jnp.float32):
    adj = build_norm_adj(edges, x.shape[0]).astype(compute_dtype)
    h = x.astype(compute_dtype)
    for idx, (w_t, b) in enumerate(params):
        w = w_t.astype(compute_dtype)
        xw = jnp.dot(h, w, preferred_element_type=jnp.float32)
        h32 = jnp.dot(adj, xw.astype(compute_dtype),
                      preferred_element_type=jnp.float32) + b
        if idx + 1 < len(params):
            h32 = jnp.maximum(h32, 0.0)
            h = h32.astype(compute_dtype)
        else:
            h = h32
    return h


# ---------------------------------------------------------------------------
if __name__ == "__main__":
    key = jax.random.PRNGKey(0)
    n_units = [17, 128, 100]
    num_nodes = 24
    num_edges = 64
    batch = 4

    k_x, k_e, k_p, k_xb, k_eb = jax.random.split(key, 5)
    x = jax.random.normal(k_x, (num_nodes, n_units[0]), jnp.float32)
    edges = jax.random.randint(k_e, (2, num_edges), 0, num_nodes, jnp.int32)
    params = init_params(k_p, n_units)

    # --- single-graph forward (module-identical semantics) ---
    out = multi_gcn_forward(params, x, edges)
    out = jax.block_until_ready(out)
    assert out.shape == (num_nodes, n_units[-1]), out.shape
    assert out.dtype == jnp.float32

    ref_bf16 = ref_forward(params, x, edges, jnp.bfloat16)   # same bf16 casting
    err_m = float(jnp.max(jnp.abs(out - ref_bf16)))
    assert jnp.allclose(out, ref_bf16, atol=1e-3, rtol=1e-3), err_m
    ref_f32 = ref_forward(params, x, edges, jnp.float32)     # full-precision ref
    err_f = float(jnp.max(jnp.abs(out - ref_f32)))
    assert jnp.allclose(out, ref_f32, atol=3e-2, rtol=3e-2), err_f

    # --- batched forward: many graphs per pallas_call (fills MXU, amortizes
    #     per-call overhead, batch axis "parallel" across TensorCores) ---
    x_b = jax.random.normal(k_xb, (batch, num_nodes, n_units[0]), jnp.float32)
    edges_b = jax.random.randint(k_eb, (batch, 2, num_edges), 0, num_nodes, jnp.int32)
    out_b = multi_gcn_forward_batched(params, x_b, edges_b)
    out_b = jax.block_until_ready(out_b)
    assert out_b.shape == (batch, num_nodes, n_units[-1]), out_b.shape
    for bi in range(batch):
        ref_bi = ref_forward(params, x_b[bi], edges_b[bi], jnp.bfloat16)
        e = float(jnp.max(jnp.abs(out_b[bi] - ref_bi)))
        assert jnp.allclose(out_b[bi], ref_bi, atol=1e-3, rtol=1e-3), (bi, e)

    print("KERNEL_OK")
</pallas_src>

<mosaic_0001>
module attributes {stable_mosaic.version = 11 : i64} {
  func.func @_fused_multigcn_kernel(%arg0: i32, %arg1: memref<1x24x24xbf16, #tpu.memory_space<vmem>>, %arg2: memref<1x24x128xbf16, #tpu.memory_space<vmem>>, %arg3: memref<128x128xbf16, #tpu.memory_space<vmem>>, %arg4: memref<1x128xf32, #tpu.memory_space<vmem>>, %arg5: memref<128x128xbf16, #tpu.memory_space<vmem>>, %arg6: memref<1x128xf32, #tpu.memory_space<vmem>>, %arg7: memref<1x24x128xf32, #tpu.memory_space<vmem>>) attributes {dimension_semantics = [#tpu.dimension_semantics<parallel>], iteration_bounds = array<i64: 1>, scalar_prefetch = 0 : i64, scratch_operands = 0 : i64, tpu.core_type = #tpu.core_type<tc>, window_params = [{transform_indices = @transform_0, window_bounds = array<i64: 1, 24, 24>}, {transform_indices = @transform_1, window_bounds = array<i64: 1, 24, 128>}, {pipeline_mode = #tpu.pipeline_mode<synchronous>, transform_indices = @transform_2, window_bounds = array<i64: 128, 128>}, {pipeline_mode = #tpu.pipeline_mode<synchronous>, transform_indices = @transform_3, window_bounds = array<i64: 1, 128>}, {pipeline_mode = #tpu.pipeline_mode<synchronous>, transform_indices = @transform_4, window_bounds = array<i64: 128, 128>}, {pipeline_mode = #tpu.pipeline_mode<synchronous>, transform_indices = @transform_5, window_bounds = array<i64: 1, 128>}, {transform_indices = @transform_6, window_bounds = array<i64: 1, 24, 128>}]} {
    %c0 = arith.constant 0 : index
    %c0_0 = arith.constant 0 : index
    %c0_1 = arith.constant 0 : index
    %0 = vector.load %arg1[%c0, %c0_0, %c0_1] : memref<1x24x24xbf16, #tpu.memory_space<vmem>>, vector<1x24x24xbf16>
    %1 = vector.shape_cast %0 : vector<1x24x24xbf16> to vector<24x24xbf16>
    %c0_2 = arith.constant 0 : index
    %c0_3 = arith.constant 0 : index
    %c0_4 = arith.constant 0 : index
    %2 = vector.load %arg2[%c0_2, %c0_3, %c0_4] : memref<1x24x128xbf16, #tpu.memory_space<vmem>>, vector<1x24x128xbf16>
    %3 = vector.shape_cast %2 : vector<1x24x128xbf16> to vector<24x128xbf16>
    %c0_5 = arith.constant 0 : index
    %c0_6 = arith.constant 0 : index
    %4 = vector.load %arg3[%c0_5, %c0_6] : memref<128x128xbf16, #tpu.memory_space<vmem>>, vector<128x128xbf16>
    %c0_7 = arith.constant 0 : index
    %c0_8 = arith.constant 0 : index
    %5 = vector.load %arg4[%c0_7, %c0_8] : memref<1x128xf32, #tpu.memory_space<vmem>>, vector<1x128xf32>
    %cst = arith.constant dense<0.000000e+00> : vector<24x128xf32>
    %6 = tpu.matmul %3, %4, %cst {dimension_numbers = #tpu.dot_dimension_numbers<[1], [0], [0], [1], [0, 0, 1, 1], [], []>} : vector<24x128xbf16>, vector<128x128xbf16>, vector<24x128xf32> -> vector<24x128xf32>
    %7 = arith.truncf %6 : vector<24x128xf32> to vector<24x128xbf16>
    %cst_9 = arith.constant dense<0.000000e+00> : vector<24x128xf32>
    %8 = tpu.matmul %1, %7, %cst_9 {dimension_numbers = #tpu.dot_dimension_numbers<[1], [0], [0], [1], [0, 0, 1, 1], [], []>} : vector<24x24xbf16>, vector<24x128xbf16>, vector<24x128xf32> -> vector<24x128xf32>
    %9 = vector.broadcast %5 : vector<1x128xf32> to vector<24x128xf32>
    %10 = arith.addf %8, %9 : vector<24x128xf32>
    %cst_10 = arith.constant 0.000000e+00 : f32
    %11 = vector.broadcast %cst_10 : f32 to vector<24x128xf32>
    %12 = arith.maximumf %10, %11 : vector<24x128xf32>
    %13 = arith.truncf %12 : vector<24x128xf32> to vector<24x128xbf16>
    %c0_11 = arith.constant 0 : index
    %c0_12 = arith.constant 0 : index
    %14 = vector.load %arg5[%c0_11, %c0_12] : memref<128x128xbf16, #tpu.memory_space<vmem>>, vector<128x128xbf16>
    %c0_13 = arith.constant 0 : index
    %c0_14 = arith.constant 0 : index
    %15 = vector.load %arg6[%c0_13, %c0_14] : memref<1x128xf32, #tpu.memory_space<vmem>>, vector<1x128xf32>
    %cst_15 = arith.constant dense<0.000000e+00> : vector<24x128xf32>
    %16 = tpu.matmul %13, %14, %cst_15 {dimension_numbers = #tpu.dot_dimension_numbers<[1], [0], [0], [1], [0, 0, 1, 1], [], []>} : vector<24x128xbf16>, vector<128x128xbf16>, vector<24x128xf32> -> vector<24x128xf32>
    %17 = arith.truncf %16 : vector<24x128xf32> to vector<24x128xbf16>
    %cst_16 = arith.constant dense<0.000000e+00> : vector<24x128xf32>
    %18 = tpu.matmul %1, %17, %cst_16 {dimension_numbers = #tpu.dot_dimension_numbers<[1], [0], [0], [1], [0, 0, 1, 1], [], []>} : vector<24x24xbf16>, vector<24x128xbf16>, vector<24x128xf32> -> vector<24x128xf32>
    %19 = vector.broadcast %15 : vector<1x128xf32> to vector<24x128xf32>
    %20 = arith.addf %18, %19 : vector<24x128xf32>
    %c0_17 = arith.constant 0 : index
    %c0_18 = arith.constant 0 : index
    %c0_19 = arith.constant 0 : index
    %21 = vector.load %arg7[%c0_17, %c0_18, %c0_19] : memref<1x24x128xf32, #tpu.memory_space<vmem>>, vector<1x24x128xf32>
    %22 = vector.shape_cast %21 : vector<1x24x128xf32> to vector<24x128xf32>
    %23 = vector.shape_cast %20 : vector<24x128xf32> to vector<1x24x128xf32>
    tpu.vector_store %arg7[%c0_17, %c0_18, %c0_19], %23 {strides = array<i32>} : memref<1x24x128xf32, #tpu.memory_space<vmem>>, vector<1x24x128xf32>,
    return
  }
  func.func @transform_0(%arg0: i32) -> (i32, i32, i32) {
    %c0_i32 = arith.constant 0 : i32
    %c0_i32_0 = arith.constant 0 : i32
    %c0_i32_1 = arith.constant 0 : i32
    return %arg0, %c0_i32, %c0_i32_0 : i32, i32, i32
  }
  func.func @transform_1(%arg0: i32) -> (i32, i32, i32) {
    %c0_i32 = arith.constant 0 : i32
    %c0_i32_0 = arith.constant 0 : i32
    %c0_i32_1 = arith.constant 0 : i32
    return %arg0, %c0_i32, %c0_i32_0 : i32, i32, i32
  }
  func.func @transform_2(%arg0: i32) -> (i32, i32) {
    %c0_i32 = arith.constant 0 : i32
    %c0_i32_0 = arith.constant 0 : i32
    %c0_i32_1 = arith.constant 0 : i32
    return %c0_i32, %c0_i32_0 : i32, i32
  }
  func.func @transform_3(%arg0: i32) -> (i32, i32) {
    %c0_i32 = arith.constant 0 : i32
    %c0_i32_0 = arith.constant 0 : i32
    %c0_i32_1 = arith.constant 0 : i32
    return %c0_i32, %c0_i32_0 : i32, i32
  }
  func.func @transform_4(%arg0: i32) -> (i32, i32) {
    %c0_i32 = arith.constant 0 : i32
    %c0_i32_0 = arith.constant 0 : i32
    %c0_i32_1 = arith.constant 0 : i32
    return %c0_i32, %c0_i32_0 : i32, i32
  }
  func.func @transform_5(%arg0: i32) -> (i32, i32) {
    %c0_i32 = arith.constant 0 : i32
    %c0_i32_0 = arith.constant 0 : i32
    %c0_i32_1 = arith.constant 0 : i32
    return %c0_i32, %c0_i32_0 : i32, i32
  }
  func.func @transform_6(%arg0: i32) -> (i32, i32, i32) {
    %c0_i32 = arith.constant 0 : i32
    %c0_i32_0 = arith.constant 0 : i32
    %c0_i32_1 = arith.constant 0 : i32
    return %arg0, %c0_i32, %c0_i32_0 : i32, i32, i32
  }
}

</mosaic_0001>

<llo_original>
// kernel: tpu_custom_call.1
$region0: #{tpu_custom_call.1}
  #allocation0 [shape = 'u32[]', space=smem, size = 0x4, offset = 0x4, fixed_abs, tag = 'smem constant byte address 0x4 - core index']
  #allocation1 [shape = 'u32[144,128]{1,0:T(1,128)}', space=vmem, size = 0x12000, scoped, tag = 'internal scratch']
  %s0 = inlined_call_operand.hbm [shape: bf16[1,24,24], index: 0, kind: input, shape index: {}]
  %s1 = inlined_call_operand.hbm [shape: bf16[1,24,128], index: 1, kind: input, shape index: {}]
  %s2 = inlined_call_operand.hbm [shape: bf16[128,128], index: 2, kind: input, shape index: {}]
  %s3 = inlined_call_operand.vmem [shape: f32[1,128], index: 3, kind: input, shape index: {}]
  %s4 = inlined_call_operand.hbm [shape: bf16[128,128], index: 4, kind: input, shape index: {}]
  %s5 = inlined_call_operand.vmem [shape: f32[1,128], index: 5, kind: input, shape index: {}]
  %s6 = inlined_call_operand.hbm [shape: f32[1,24,128], index: 6, kind: output, shape index: {}]
  %s7 = sld [smem:[#allocation0]]
  $region50: #{tpu_custom_call.1} parent=0
    _
  %s9 = ssub.s32 1, %s7
  %s10 = scalar_select 0, %s9, %s7
  $region1: #{tpu_custom_call.1} parent=0
    #allocation2 [shape = 'u8[6144]{0}', space=vmem, size = 0x1800, scoped, tag = 'input window, operand 0, single buffered']
    #allocation3 [shape = 's32[1]{0}', space=sflag, size = 0x4, scoped, tag = 'scoped memory for tpu_custom_call.1']
    #allocation4 [shape = 's32[1]{0}', space=sflag, size = 0x4, scoped, tag = 'scoped memory for tpu_custom_call.1']
    #allocation5 [shape = 'u8[6144]{0}', space=vmem, size = 0x1800, scoped, tag = 'input window, operand 1, single buffered']
    #allocation6 [shape = 's32[1]{0}', space=sflag, size = 0x4, scoped, tag = 'scoped memory for tpu_custom_call.1']
    #allocation7 [shape = 'u8[32768]{0}', space=vmem, size = 0x8000, scoped, tag = 'input window, operand 2, single buffered']
    #allocation8 [shape = 'u8[32768]{0}', space=vmem, size = 0x8000, scoped, tag = 'input window, operand 4, single buffered']
    #allocation9 [shape = 's32[1]{0}', space=sflag, size = 0x4, scoped, tag = 'scoped memory for tpu_custom_call.1']
    #allocation10 [shape = 'u8[12288]{0}', space=vmem, size = 0x3000, scoped, tag = 'output window, operand 0, single buffered']
    %11 = vsyncpa [#allocation3], 0
    %12 = vsyncpa [#allocation6], 0
    %13 = vsyncpa [#allocation9], 0
    %14 = vsyncpa [#allocation4], 0
    // Predicated region
    $region2: #{tpu_custom_call.1} parent=1 // pred_check
      _
    $region3: #{tpu_custom_call.1} parent=1 // pred_check_branch
      %16 = sbr.rel (0) target = $region5
    $region4: #{tpu_custom_call.1} parent=1 // pred_region
      %s18 = ssub.s32 192, 192
      %19 = vsyncadd [#allocation3], %s18
      %s20 = sshll.u32 [#allocation2], 4
      %s21 = int_to_ptr.vmem [resolvable:$true] %s20
      %26 = dma.hbm_to_vmem [thread:$0]  %s0, 192, %s21, [#allocation3], 64, 64, 4
    $region5: #{tpu_custom_call.1} parent=1 // pred_fallthru
      _
    // Predicated region
    $region6: #{tpu_custom_call.1} parent=1 // pred_check
      _
    $region7: #{tpu_custom_call.1} parent=1 // pred_check_branch
      %28 = sbr.rel (0) target = $region9
    $region8: #{tpu_custom_call.1} parent=1 // pred_region
      %s30 = ssub.s32 192, 192
      %31 = vsyncadd [#allocation6], %s30
      %s32 = sshll.u32 [#allocation5], 4
      %s33 = int_to_ptr.vmem [resolvable:$true] %s32
      %38 = dma.hbm_to_vmem [thread:$0]  %s1, 192, %s33, [#allocation6], 64, 64, 4
    $region9: #{tpu_custom_call.1} parent=1 // pred_fallthru
      _
    // Predicated region
    $region10: #{tpu_custom_call.1} parent=1 // pred_check
      _
    $region11: #{tpu_custom_call.1} parent=1 // pred_check_branch
      %40 = sbr.rel (0) target = $region13
    $region12: #{tpu_custom_call.1} parent=1 // pred_region
      %s42 = ssub.s32 1024, 1024
      %43 = vsyncadd [#allocation6], %s42
      %s44 = sshll.u32 [#allocation7], 4
      %s45 = int_to_ptr.vmem [resolvable:$true] %s44
      %50 = dma.hbm_to_vmem [thread:$0]  %s2, 1024, %s45, [#allocation6], 64, 64, 4
    $region13: #{tpu_custom_call.1} parent=1 // pred_fallthru
      _
    // Predicated region
    $region14: #{tpu_custom_call.1} parent=1 // pred_check
      _
    $region15: #{tpu_custom_call.1} parent=1 // pred_check_branch
      %52 = sbr.rel (0) target = $region17
    $region16: #{tpu_custom_call.1} parent=1 // pred_region
      _
    $region17: #{tpu_custom_call.1} parent=1 // pred_fallthru
      _
    // Predicated region
    $region18: #{tpu_custom_call.1} parent=1 // pred_check
      _
    $region19: #{tpu_custom_call.1} parent=1 // pred_check_branch
      %54 = sbr.rel (0) target = $region21
    $region20: #{tpu_custom_call.1} parent=1 // pred_region
      %s56 = ssub.s32 1024, 1024
      %57 = vsyncadd [#allocation9], %s56
      %s58 = sshll.u32 [#allocation8], 4
      %s59 = int_to_ptr.vmem [resolvable:$true] %s58
      %64 = dma.hbm_to_vmem [thread:$0]  %s4, 1024, %s59, [#allocation9], 64, 64, 4
    $region21: #{tpu_custom_call.1} parent=1 // pred_fallthru
      _
    // Predicated region
    $region22: #{tpu_custom_call.1} parent=1 // pred_check
      _
    $region23: #{tpu_custom_call.1} parent=1 // pred_check_branch
      %66 = sbr.rel (0) target = $region25
    $region24: #{tpu_custom_call.1} parent=1 // pred_region
      _
    $region25: #{tpu_custom_call.1} parent=1 // pred_fallthru
      _
    // Predicated region
    $region26: #{tpu_custom_call.1} parent=1 // pred_check
      _
    $region27: #{tpu_custom_call.1} parent=1 // pred_check_branch
      %68 = sbr.rel (0) target = $region29
    $region28: #{tpu_custom_call.1} parent=1 // pred_region
      %69 = dma.done [#allocation3], 192
    $region29: #{tpu_custom_call.1} parent=1 // pred_fallthru
      _
    // Predicated region
    $region30: #{tpu_custom_call.1} parent=1 // pred_check
      _
    $region31: #{tpu_custom_call.1} parent=1 // pred_check_branch
      %71 = sbr.rel (0) target = $region33
    $region32: #{tpu_custom_call.1} parent=1 // pred_region
      %72 = dma.done [#allocation6], 192
    $region33: #{tpu_custom_call.1} parent=1 // pred_fallthru
      _
    // Predicated region
    $region34: #{tpu_custom_call.1} parent=1 // pred_check
      _
    $region35: #{tpu_custom_call.1} parent=1 // pred_check_branch
      %74 = sbr.rel (0) target = $region37
    $region36: #{tpu_custom_call.1} parent=1 // pred_region
      %75 = dma.done [#allocation6], 1024
    $region37: #{tpu_custom_call.1} parent=1 // pred_fallthru
      _
    // Predicated region
    $region38: #{tpu_custom_call.1} parent=1 // pred_check
      _
    $region39: #{tpu_custom_call.1} parent=1 // pred_check_branch
      %77 = sbr.rel (0) target = $region41
    $region40: #{tpu_custom_call.1} parent=1 // pred_region
      %78 = dma.done [#allocation9], 1024
    $region41: #{tpu_custom_call.1} parent=1 // pred_fallthru
      _
    %v80 = vld [vmem:[#allocation2] sm:$0xf]
    %v81 = vld [vmem:[#allocation2 + $0x4] sm:$0xf]
    %v82 = vld [vmem:[#allocation2 + $0x8] sm:$0xf]
    %v83 = vld [vmem:[#allocation5] sm:$0xf]
    %v84 = vld [vmem:[#allocation5 + $0x4] sm:$0xf]
    %v85 = vld [vmem:[#allocation5 + $0x8] sm:$0xf]
    %v86 = vld [vmem:[#allocation7] sm:$0xf]
    %v87 = vld [vmem:[#allocation7 + $0x4] sm:$0xf]
    %v88 = vld [vmem:[#allocation7 + $0x8] sm:$0xf]
    %v89 = vld [vmem:[#allocation7 + $0xc] sm:$0xf]
    %v90 = vld [vmem:[#allocation7 + $0x10] sm:$0xf]
    %v91 = vld [vmem:[#allocation7 + $0x14] sm:$0xf]
    %v92 = vld [vmem:[#allocation7 + $0x18] sm:$0xf]
    %v93 = vld [vmem:[#allocation7 + $0x1c] sm:$0xf]
    %v94 = vld [vmem:[#allocation7 + $0x20] sm:$0xf]
    %v95 = vld [vmem:[#allocation7 + $0x24] sm:$0xf]
    %v96 = vld [vmem:[#allocation7 + $0x28] sm:$0xf]
    %v97 = vld [vmem:[#allocation7 + $0x2c] sm:$0xf]
    %v98 = vld [vmem:[#allocation7 + $0x30] sm:$0xf]
    %v99 = vld [vmem:[#allocation7 + $0x34] sm:$0xf]
    %v100 = vld [vmem:[#allocation7 + $0x38] sm:$0xf]
    %v101 = vld [vmem:[#allocation7 + $0x3c] sm:$0xf]
    %v102 = vld [vmem:[%s3] sm:$0x1]
    %v106 = vunpack.c.l.b16 %v83
    %v107 = vunpack.c.l.b16 %v84
    %v108 = vunpack.c.l.b16 %v85
    %v109 = vpack.c.b16 %v107, %v106
    %v110 = vpack.c.b16 %v108, %v108
    %v129 = vunpack.c.l.b16 %v86
    %v130 = vunpack.c.l.b16 %v87
    %v131 = vunpack.c.l.b16 %v88
    %v132 = vunpack.c.l.b16 %v89
    %v133 = vunpack.c.l.b16 %v90
    %v134 = vunpack.c.l.b16 %v91
    %v135 = vunpack.c.l.b16 %v92
    %v136 = vunpack.c.l.b16 %v93
    %v137 = vunpack.c.l.b16 %v94
    %v138 = vunpack.c.l.b16 %v95
    %v139 = vunpack.c.l.b16 %v96
    %v140 = vunpack.c.l.b16 %v97
    %v141 = vunpack.c.l.b16 %v98
    %v142 = vunpack.c.l.b16 %v99
    %v143 = vunpack.c.l.b16 %v100
    %v144 = vunpack.c.l.b16 %v101
    %v145 = vpack.c.b16 %v130, %v129
    %v146 = vpack.c.b16 %v132, %v131
    %v147 = vpack.c.b16 %v134, %v133
    %v148 = vpack.c.b16 %v136, %v135
    %v149 = vpack.c.b16 %v138, %v137
    %v150 = vpack.c.b16 %v140, %v139
    %v151 = vpack.c.b16 %v142, %v141
    %v152 = vpack.c.b16 %v144, %v143
    %161 = vmatprep.subr.bf16.mxu0 0
    %162 = vmatpush1.bf16.msra.mxu0 %v145
    %163 = vmatprep.subr.bf16.mxu0 0
    %164 = vmatpush1.bf16.msra.mxu0 %v146
    %165 = vmatprep.subr.bf16.mxu0 0
    %166 = vmatpush1.bf16.msra.mxu0 %v147
    %167 = vmatprep.subr.bf16.mxu0 0
    %168 = vmatpush1.bf16.msra.mxu0 %v148
    %169 = vmatprep.subr.bf16.mxu0 0
    %170 = vmatpush1.bf16.msra.mxu0 %v149
    %171 = vmatprep.subr.bf16.mxu0 0
    %172 = vmatpush1.bf16.msra.mxu0 %v150
    %173 = vmatprep.subr.bf16.mxu0 0
    %174 = vmatpush1.bf16.msra.mxu0 %v151
    %175 = vmatprep.subr.bf16.mxu0 0
    %176 = vmatpush1.bf16.msra.mxu0 %v152
    %177 = vmatprep.subr.bf16.mxu0 0
    %178 = vmatpush1.bf16.msra.mxu0 0
    %179 = vmatprep.subr.bf16.mxu0 0
    %180 = vmatpush1.bf16.msra.mxu0 0
    %181 = vmatprep.subr.bf16.mxu0 0
    %182 = vmatpush1.bf16.msra.mxu0 0
    %183 = vmatprep.subr.bf16.mxu0 0
    %184 = vmatpush1.bf16.msra.mxu0 0
    %185 = vmatprep.subr.bf16.mxu0 0
    %186 = vmatpush1.bf16.msra.mxu0 0
    %187 = vmatprep.subr.bf16.mxu0 0
    %188 = vmatpush1.bf16.msra.mxu0 0
    %189 = vmatprep.subr.bf16.mxu0 0
    %190 = vmatpush1.bf16.msra.mxu0 0
    %191 = vmatprep.subr.bf16.mxu0 0
    %192 = vmatpush1.bf16.msra.mxu0 0
    %193 = vmatprep.mubr.bf16.mxu0 0
    %194 = vmatmul.mubr.bf16.gmra.mrb[0].mxu0 %v109
    %v195 = vpop.f32.mrb[0].mxu0
    %v196 = vadd.f32 0.0, %v195
    %v197 = vpop.f32.mrb[0].mxu0
    %v198 = vpop.f32.mrb[0].mxu0
    %v199 = vadd.f32 0.0, %v198
    %v200 = vpop.f32.mrb[0].mxu0
    %201 = vmatprep.mubr.bf16.mxu0 0
    %202 = vmatmul.mubr.bf16.gmra.mrb[0].mxu0 %v110
    %v203 = vpop.f32.mrb[0].mxu0
    %v204 = vadd.f32 0.0, %v203
    %v205 = vpop.f32.mrb[0].mxu0
    %v206 = vpop.f32.mrb[0].mxu0
    %v207 = vpop.f32.mrb[0].mxu0
    %208 = vdwg.mxu0
    %v209 = vpack.c.bf16 %v199, %v196
    %v210 = vpack.c.bf16 %v204, %v204
    %v212 = vlaneseq
    %v213 = vshrl.u32 %v212, 7
    %v214 = vsub.s32 0, %v213
    %v215 = vrot.slane %v102, %v214
    %v220 = vunpack.c.l.b16 %v80
    %v221 = vunpack.c.l.b16 %v81
    %v222 = vunpack.c.l.b16 %v82
    %v223 = vpack.c.b16 %v221, %v220
    %v224 = vpack.c.b16 %v222, %v222
    %vm225 = vcmask 195584
    %v227 = vsel %vm225, %v223, 0
    %v230 = vsel %vm225, %v224, 0
    %vm232 = vcmask 1043456
    %v234 = vsel %vm232, %v210, 0
    %236 = vmatprep.subr.bf16.mxu0 0
    %237 = vmatpush1.bf16.msra.mxu0 %v209
    %238 = vmatprep.subr.bf16.mxu0 0
    %239 = vmatpush1.bf16.msra.mxu0 %v234
    %240 = vmatprep.subr.bf16.mxu0 0
    %241 = vmatpush1.bf16.msra.mxu0 0
    %242 = vmatprep.subr.bf16.mxu0 0
    %243 = vmatpush1.bf16.msra.mxu0 0
    %244 = vmatprep.subr.bf16.mxu0 0
    %245 = vmatpush1.bf16.msra.mxu0 0
    %246 = vmatprep.subr.bf16.mxu0 0
    %247 = vmatpush1.bf16.msra.mxu0 0
    %248 = vmatprep.subr.bf16.mxu0 0
    %249 = vmatpush1.bf16.msra.mxu0 0
    %250 = vmatprep.subr.bf16.mxu0 0
    %251 = vmatpush1.bf16.msra.mxu0 0
    %252 = vmatprep.subr.bf16.mxu0 0
    %253 = vmatpush1.bf16.msra.mxu0 0
    %254 = vmatprep.subr.bf16.mxu0 0
    %255 = vmatpush1.bf16.msra.mxu0 0
    %256 = vmatprep.subr.bf16.mxu0 0
    %257 = vmatpush1.bf16.msra.mxu0 0
    %258 = vmatprep.subr.bf16.mxu0 0
    %259 = vmatpush1.bf16.msra.mxu0 0
    %260 = vmatprep.subr.bf16.mxu0 0
    %261 = vmatpush1.bf16.msra.mxu0 0
    %262 = vmatprep.subr.bf16.mxu0 0
    %263 = vmatpush1.bf16.msra.mxu0 0
    %264 = vmatprep.subr.bf16.mxu0 0
    %265 = vmatpush1.bf16.msra.mxu0 0
    %266 = vmatprep.subr.bf16.mxu0 0
    %267 = vmatpush1.bf16.msra.mxu0 0
    %268 = vmatprep.mubr.bf16.mxu0 0
    %269 = vmatmul.mubr.bf16.gmra.mrb[0].mxu0 %v227
    %v270 = vpop.f32.mrb[0].mxu0
    %v271 = vadd.f32 %v215, %v270
    %v272 = vpop.f32.mrb[0].mxu0
    %v273 = vpop.f32.mrb[0].mxu0
    %v274 = vadd.f32 %v215, %v273
    %v275 = vpop.f32.mrb[0].mxu0
    %276 = vmatprep.mubr.bf16.mxu0 0
    %277 = vmatmul.mubr.bf16.gmra.mrb[0].mxu0 %v230
    %v278 = vpop.f32.mrb[0].mxu0
    %v279 = vadd.f32 %v215, %v278
    %v280 = vpop.f32.mrb[0].mxu0
    %v281 = vpop.f32.mrb[0].mxu0
    %v282 = vpop.f32.mrb[0].mxu0
    %283 = vdwg.mxu0
    %v284 = vmax.f32 %v271, 0.0
    %v285 = vmax.f32 %v274, 0.0
    %v286 = vmax.f32 %v279, 0.0
    %v287 = vpack.c.bf16 %v285, %v284
    %v288 = vpack.c.bf16 %v286, %v286
    %v289 = vld [vmem:[#allocation8] sm:$0xf]
    %v290 = vld [vmem:[#allocation8 + $0x4] sm:$0xf]
    %v291 = vld [vmem:[#allocation8 + $0x8] sm:$0xf]
    %v292 = vld [vmem:[#allocation8 + $0xc] sm:$0xf]
    %v293 = vld [vmem:[#allocation8 + $0x10] sm:$0xf]
    %v294 = vld [vmem:[#allocation8 + $0x14] sm:$0xf]
    %v295 = vld [vmem:[#allocation8 + $0x18] sm:$0xf]
    %v296 = vld [vmem:[#allocation8 + $0x1c] sm:$0xf]
    %v297 = vld [vmem:[#allocation8 + $0x20] sm:$0xf]
    %v298 = vld [vmem:[#allocation8 + $0x24] sm:$0xf]
    %v299 = vld [vmem:[#allocation8 + $0x28] sm:$0xf]
    %v300 = vld [vmem:[#allocation8 + $0x2c] sm:$0xf]
    %v301 = vld [vmem:[#allocation8 + $0x30] sm:$0xf]
    %v302 = vld [vmem:[#allocation8 + $0x34] sm:$0xf]
    %v303 = vld [vmem:[#allocation8 + $0x38] sm:$0xf]
    %v304 = vld [vmem:[#allocation8 + $0x3c] sm:$0xf]
    %v305 = vld [vmem:[%s5] sm:$0x1]
    %v322 = vunpack.c.l.b16 %v289
    %v323 = vunpack.c.l.b16 %v290
    %v324 = vunpack.c.l.b16 %v291
    %v325 = vunpack.c.l.b16 %v292
    %v326 = vunpack.c.l.b16 %v293
    %v327 = vunpack.c.l.b16 %v294
    %v328 = vunpack.c.l.b16 %v295
    %v329 = vunpack.c.l.b16 %v296
    %v330 = vunpack.c.l.b16 %v297
    %v331 = vunpack.c.l.b16 %v298
    %v332 = vunpack.c.l.b16 %v299
    %v333 = vunpack.c.l.b16 %v300
    %v334 = vunpack.c.l.b16 %v301
    %v335 = vunpack.c.l.b16 %v302
    %v336 = vunpack.c.l.b16 %v303
    %v337 = vunpack.c.l.b16 %v304
    %v338 = vpack.c.b16 %v323, %v322
    %v339 = vpack.c.b16 %v325, %v324
    %v340 = vpack.c.b16 %v327, %v326
    %v341 = vpack.c.b16 %v329, %v328
    %v342 = vpack.c.b16 %v331, %v330
    %v343 = vpack.c.b16 %v333, %v332
    %v344 = vpack.c.b16 %v335, %v334
    %v345 = vpack.c.b16 %v337, %v336
    %354 = vmatprep.subr.bf16.mxu0 0
    %355 = vmatpush1.bf16.msra.mxu0 %v338
    %356 = vmatprep.subr.bf16.mxu0 0
    %357 = vmatpush1.bf16.msra.mxu0 %v339
    %358 = vmatprep.subr.bf16.mxu0 0
    %359 = vmatpush1.bf16.msra.mxu0 %v340
    %360 = vmatprep.subr.bf16.mxu0 0
    %361 = vmatpush1.bf16.msra.mxu0 %v341
    %362 = vmatprep.subr.bf16.mxu0 0
    %363 = vmatpush1.bf16.msra.mxu0 %v342
    %364 = vmatprep.subr.bf16.mxu0 0
    %365 = vmatpush1.bf16.msra.mxu0 %v343
    %366 = vmatprep.subr.bf16.mxu0 0
    %367 = vmatpush1.bf16.msra.mxu0 %v344
    %368 = vmatprep.subr.bf16.mxu0 0
    %369 = vmatpush1.bf16.msra.mxu0 %v345
    %370 = vmatprep.subr.bf16.mxu0 0
    %371 = vmatpush1.bf16.msra.mxu0 0
    %372 = vmatprep.subr.bf16.mxu0 0
    %373 = vmatpush1.bf16.msra.mxu0 0
    %374 = vmatprep.subr.bf16.mxu0 0
    %375 = vmatpush1.bf16.msra.mxu0 0
    %376 = vmatprep.subr.bf16.mxu0 0
    %377 = vmatpush1.bf16.msra.mxu0 0
    %378 = vmatprep.subr.bf16.mxu0 0
    %379 = vmatpush1.bf16.msra.mxu0 0
    %380 = vmatprep.subr.bf16.mxu0 0
    %381 = vmatpush1.bf16.msra.mxu0 0
    %382 = vmatprep.subr.bf16.mxu0 0
    %383 = vmatpush1.bf16.msra.mxu0 0
    %384 = vmatprep.subr.bf16.mxu0 0
    %385 = vmatpush1.bf16.msra.mxu0 0
    %386 = vmatprep.mubr.bf16.mxu0 0
    %387 = vmatmul.mubr.bf16.gmra.mrb[0].mxu0 %v287
    %v388 = vpop.f32.mrb[0].mxu0
    %v389 = vadd.f32 0.0, %v388
    %v390 = vpop.f32.mrb[0].mxu0
    %v391 = vpop.f32.mrb[0].mxu0
    %v392 = vadd.f32 0.0, %v391
    %v393 = vpop.f32.mrb[0].mxu0
    %394 = vmatprep.mubr.bf16.mxu0 0
    %395 = vmatmul.mubr.bf16.gmra.mrb[0].mxu0 %v288
    %v396 = vpop.f32.mrb[0].mxu0
    %v397 = vadd.f32 0.0, %v396
    %v398 = vpop.f32.mrb[0].mxu0
    %v399 = vpop.f32.mrb[0].mxu0
    %v400 = vpop.f32.mrb[0].mxu0
    %401 = vdwg.mxu0
    %v402 = vpack.c.bf16 %v392, %v389
    %v403 = vpack.c.bf16 %v397, %v397
    %v405 = vlaneseq
    %v406 = vshrl.u32 %v405, 7
    %v407 = vsub.s32 0, %v406
    %v408 = vrot.slane %v305, %v407
    %v411 = vsel %vm232, %v403, 0
    %413 = vmatprep.subr.bf16.mxu0 0
    %414 = vmatpush1.bf16.msra.mxu0 %v402
    %415 = vmatprep.subr.bf16.mxu0 0
    %416 = vmatpush1.bf16.msra.mxu0 %v411
    %417 = vmatprep.subr.bf16.mxu0 0
    %418 = vmatpush1.bf16.msra.mxu0 0
    %419 = vmatprep.subr.bf16.mxu0 0
    %420 = vmatpush1.bf16.msra.mxu0 0
    %421 = vmatprep.subr.bf16.mxu0 0
    %422 = vmatpush1.bf16.msra.mxu0 0
    %423 = vmatprep.subr.bf16.mxu0 0
    %424 = vmatpush1.bf16.msra.mxu0 0
    %425 = vmatprep.subr.bf16.mxu0 0
    %426 = vmatpush1.bf16.msra.mxu0 0
    %427 = vmatprep.subr.bf16.mxu0 0
    %428 = vmatpush1.bf16.msra.mxu0 0
    %429 = vmatprep.subr.bf16.mxu0 0
    %430 = vmatpush1.bf16.msra.mxu0 0
    %431 = vmatprep.subr.bf16.mxu0 0
    %432 = vmatpush1.bf16.msra.mxu0 0
    %433 = vmatprep.subr.bf16.mxu0 0
    %434 = vmatpush1.bf16.msra.mxu0 0
    %435 = vmatprep.subr.bf16.mxu0 0
    %436 = vmatpush1.bf16.msra.mxu0 0
    %437 = vmatprep.subr.bf16.mxu0 0
    %438 = vmatpush1.bf16.msra.mxu0 0
    %439 = vmatprep.subr.bf16.mxu0 0
    %440 = vmatpush1.bf16.msra.mxu0 0
    %441 = vmatprep.subr.bf16.mxu0 0
    %442 = vmatpush1.bf16.msra.mxu0 0
    %443 = vmatprep.subr.bf16.mxu0 0
    %444 = vmatpush1.bf16.msra.mxu0 0
    %445 = vmatprep.mubr.bf16.mxu0 0
    %446 = vmatmul.mubr.bf16.gmra.mrb[0].mxu0 %v227
    %v447 = vpop.f32.mrb[0].mxu0
    %v448 = vadd.f32 %v408, %v447
    %v449 = vpop.f32.mrb[0].mxu0
    %v450 = vpop.f32.mrb[0].mxu0
    %v451 = vadd.f32 %v408, %v450
    %v452 = vpop.f32.mrb[0].mxu0
    %453 = vmatprep.mubr.bf16.mxu0 0
    %454 = vmatmul.mubr.bf16.gmra.mrb[0].mxu0 %v230
    %v455 = vpop.f32.mrb[0].mxu0
    %v456 = vadd.f32 %v408, %v455
    %v457 = vpop.f32.mrb[0].mxu0
    %v458 = vpop.f32.mrb[0].mxu0
    %v459 = vpop.f32.mrb[0].mxu0
    %460 = vdwg.mxu0
    %461 = vst [vmem:[#allocation10] sm:$0xff] %v448
    %462 = vst [vmem:[#allocation10 + $0x8] sm:$0xff] %v451
    %463 = vst [vmem:[#allocation10 + $0x10] sm:$0xff] %v456
    // Predicated region
    $region42: #{tpu_custom_call.1} parent=1 // pred_check
      _
    $region43: #{tpu_custom_call.1} parent=1 // pred_check_branch
      %465 = sbr.rel (0) target = $region45
    $region44: #{tpu_custom_call.1} parent=1 // pred_region
      %s467 = ssub.s32 384, 384
      %468 = vsyncadd [#allocation4], %s467
      %s469 = sshll.u32 [#allocation10], 4
      %s470 = int_to_ptr.vmem [resolvable:$true] %s469
      %475 = dma.vmem_to_hbm [thread:$0]  %s470, 384, %s6, [#allocation4], 128, 128, 8
    $region45: #{tpu_custom_call.1} parent=1 // pred_fallthru
      _
    // Predicated region
    $region46: #{tpu_custom_call.1} parent=1 // pred_check
      _
    $region47: #{tpu_custom_call.1} parent=1 // pred_check_branch
      %477 = sbr.rel (0) target = $region49
    $region48: #{tpu_custom_call.1} parent=1 // pred_region
      %478 = dma.done [#allocation4], 384
    $region49: #{tpu_custom_call.1} parent=1 // pred_fallthru
      _
    %479 = vsyncpa [#allocation3], 1
    %480 = vsyncpa [#allocation6], 1
    %481 = vsyncpa [#allocation9], 1
    %482 = vsyncpa [#allocation4], 1

</llo_original>
